<compile_context>
chip_gen: v6e
topology: v6e:2x2x1
jax: 0.10.0
libtpu: 0.0.40
codegen_flags: <defaults>
</compile_context>

<pallas_src>
import functools

import jax
import jax.numpy as jnp
import numpy as np
from jax.experimental import pallas as pl
from jax.experimental.pallas import tpu as pltpu

LN_EPS = 1e-5


def _rnn_recurrence_kernel(px_ref, h0_ref, whh_t_ref, gamma_ref, beta_ref,
                           out_ref, hn_ref, h_scr,
                           *, tt, t_real, t_pad, h_real):
    """One chunk of `tt` timesteps.  Grid axis 0 = time chunks (sequential).

    The hidden state is carried across chunks in the VMEM scratch `h_scr`.
    px_ref already contains x@W_ih.T + b_ih + b_hh + internal (precomputed).
    """
    c = pl.program_id(0)

    @pl.when(c == 0)
    def _():
        h_scr[...] = h0_ref[...].astype(jnp.float32)

    # Hoisted loads / constants (resident across the unrolled inner loop).
    whh_t = whh_t_ref[...]                         # (Hp, Hp)
    gamma = gamma_ref[...]                         # (1, Hp), 0 in padded lanes
    beta = beta_ref[...]                           # (1, Hp), 0 in padded lanes
    hp = whh_t.shape[1]
    inv_h = jnp.float32(1.0 / h_real)

    # Lane mask selecting the real H columns.  Padded columns of `pre` are
    # exactly zero (zero-padded px and zero-padded W_hh), so the mean needs no
    # masking; only the centered term does (for the variance).
    lane = jax.lax.broadcasted_iota(jnp.int32, (1, hp), 1)
    lane_mask = (lane < h_real).astype(jnp.float32)

    def step(i, h):
        # Sequential critical path: one (Bp,Hp)x(Hp,Hp) MXU matmul + LN + tanh.
        pre = px_ref[i] + jnp.dot(h, whh_t, preferred_element_type=jnp.float32)
        mean = jnp.sum(pre, axis=-1, keepdims=True) * inv_h
        cent = pre - mean
        cm = cent * lane_mask                       # mask only for the variance
        var = jnp.sum(cm * cm, axis=-1, keepdims=True) * inv_h
        # gamma is 0 in padded lanes -> padded lanes of ln are 0 -> tanh -> 0.
        ln = cent * (jax.lax.rsqrt(var + LN_EPS) * gamma) + beta
        h_new = jnp.tanh(ln)
        out_ref[i] = h_new.astype(out_ref.dtype)
        if t_pad > t_real:
            # Freeze the carried state on padded tail timesteps.
            h_new = jnp.where(c * tt + i < t_real, h_new, h)
        return h_new

    h_final = jax.lax.fori_loop(0, tt, step, h_scr[...], unroll=True)
    h_scr[...] = h_final

    # Only the last chunk's state matters -> no redundant store every step.
    @pl.when(c == pl.num_programs(0) - 1)
    def _():
        hn_ref[...] = h_final.astype(hn_ref.dtype)


def _pick_time_chunk(t, bp, hp, max_tt=32, max_block_bytes=2 << 20):
    """Timesteps per grid step: amortize per-step overhead, stay inside VMEM,
    and bound the unrolled inner-loop size."""
    by_vmem = max(1, max_block_bytes // (bp * hp * 4))
    return int(min(t, max_tt, by_vmem))


@jax.jit
def rnn_layer_forward(x, internal, state, params):
    """Mirror of RNNLayer.forward with a LayerNorm RNN cell (batch_first=True).

    x        : (B, T, I)
    internal : (B, T)
    state    : (1, B, H)
    returns  : (outputs (B, T, H), state (1, B, H))
    """
    wih, whh, bih, bhh, gamma, beta = params
    B, T, I = x.shape
    H = whh.shape[0]
    f32 = jnp.float32

    # ---- padded / tiled geometry -----------------------------------------
    Bp = int(np.ceil(B / 8) * 8)          # sublane-align batch
    Hp = int(np.ceil(H / 128) * 128)      # lane-align hidden
    TT = _pick_time_chunk(T, Bp, Hp)
    n_chunks = int(np.ceil(T / TT))
    Tp = n_chunks * TT

    # ---- hoisted input projection (one big, fully parallel matmul) --------
    #   px[t, b] = x[b, t] @ W_ih.T + (b_ih + b_hh) + internal[b, t]
    # Emitted time-major directly so XLA fuses the transpose into the matmul.
    px_tm = (jnp.einsum("bti,hi->tbh", x.astype(f32), wih.astype(f32))
             + (bih + bhh).astype(f32)
             + internal.astype(f32).T[:, :, None])                  # (T, B, H)
    px_tm = jnp.pad(px_tm, ((0, Tp - T), (0, Bp - B), (0, Hp - H)))

    h0 = jnp.pad(state[0].astype(f32), ((0, Bp - B), (0, Hp - H)))   # (Bp, Hp)
    whh_t = jnp.pad(whh.T.astype(f32), ((0, Hp - H), (0, Hp - H)))   # (Hp, Hp)
    gamma_p = jnp.pad(gamma.astype(f32), (0, Hp - H)).reshape(1, Hp)
    beta_p = jnp.pad(beta.astype(f32), (0, Hp - H)).reshape(1, Hp)

    kernel = functools.partial(_rnn_recurrence_kernel,
                               tt=TT, t_real=T, t_pad=Tp, h_real=H)

    out_tm, h_n = pl.pallas_call(
        kernel,
        out_shape=(
            jax.ShapeDtypeStruct((Tp, Bp, Hp), x.dtype),   # outputs, time-major
            jax.ShapeDtypeStruct((Bp, Hp), x.dtype),       # final hidden state
        ),
        grid_spec=pltpu.PrefetchScalarGridSpec(
            num_scalar_prefetch=0,
            grid=(n_chunks,),
            in_specs=[
                pl.BlockSpec((TT, Bp, Hp), lambda c: (c, 0, 0)),  # px chunk
                pl.BlockSpec((Bp, Hp), lambda c: (0, 0)),         # h0 (resident)
                pl.BlockSpec((Hp, Hp), lambda c: (0, 0)),         # W_hh.T (resident)
                pl.BlockSpec((1, Hp), lambda c: (0, 0)),          # gamma
                pl.BlockSpec((1, Hp), lambda c: (0, 0)),          # beta
            ],
            out_specs=[
                pl.BlockSpec((TT, Bp, Hp), lambda c: (c, 0, 0)),  # outputs
                pl.BlockSpec((Bp, Hp), lambda c: (0, 0)),         # final state
            ],
            scratch_shapes=[pltpu.VMEM((Bp, Hp), jnp.float32)],   # hidden carry
        ),
        compiler_params=pltpu.CompilerParams(
            dimension_semantics=("arbitrary",),            # time is sequential
            vmem_limit_bytes=32 * 1024 * 1024,
        ),
    )(px_tm, h0, whh_t, gamma_p, beta_p)

    outputs = jnp.transpose(out_tm[:T, :B, :H], (1, 0, 2))           # (B, T, H)
    return outputs, h_n[None, :B, :H]                                # (1, B, H)


def _reference_forward(x, internal, state, params):
    """Pure-JAX reference of the same recurrence (for correctness check)."""
    wih, whh, bih, bhh, gamma, beta = params

    def step(h, inp):
        xt, ut = inp
        pre = xt @ wih.T + h @ whh.T + bih + bhh + ut[:, None]
        mean = pre.mean(-1, keepdims=True)
        var = ((pre - mean) ** 2).mean(-1, keepdims=True)
        ln = (pre - mean) / jnp.sqrt(var + LN_EPS) * gamma + beta
        hn = jnp.tanh(ln)
        return hn, hn

    h_n, ys = jax.lax.scan(step, state[0],
                           (jnp.transpose(x, (1, 0, 2)), internal.T))
    return jnp.transpose(ys, (1, 0, 2)), h_n[None]


if __name__ == "__main__":
    # Small shapes consistent with the module: batch=2, seq=8, input=16, hidden=32.
    B, T, I, H = 2, 8, 16, 32
    key = jax.random.PRNGKey(0)
    keys = jax.random.split(key, 8)

    bound = 1.0 / np.sqrt(H)
    wih = jax.random.uniform(keys[0], (H, I), jnp.float32, -bound, bound)
    whh = jax.random.uniform(keys[1], (H, H), jnp.float32, -bound, bound)
    bih = jax.random.uniform(keys[2], (H,), jnp.float32, -bound, bound)
    bhh = jax.random.uniform(keys[3], (H,), jnp.float32, -bound, bound)
    gamma = jnp.ones((H,), jnp.float32)
    beta = jnp.zeros((H,), jnp.float32)
    params = (wih, whh, bih, bhh, gamma, beta)

    x = jax.random.normal(keys[4], (B, T, I), jnp.float32)
    internal = jax.random.normal(keys[5], (B, T), jnp.float32)
    state = jnp.zeros((1, B, H), jnp.float32)   # default zero initial state

    outputs, h_n = rnn_layer_forward(x, internal, state, params)
    outputs = jax.block_until_ready(outputs)
    h_n = jax.block_until_ready(h_n)

    ref_out, ref_hn = _reference_forward(x, internal, state, params)
    np.testing.assert_allclose(np.asarray(outputs), np.asarray(ref_out),
                               rtol=1e-5, atol=1e-5)
    np.testing.assert_allclose(np.asarray(h_n), np.asarray(ref_hn),
                               rtol=1e-5, atol=1e-5)

    assert outputs.shape == (B, T, H) and h_n.shape == (1, B, H)
    print("KERNEL_OK")
</pallas_src>

<mosaic_0001>
module attributes {stable_mosaic.version = 11 : i64} {
  func.func @_rnn_recurrence_kernel(%arg0: i32, %arg1: memref<8x8x128xf32, #tpu.memory_space<vmem>>, %arg2: memref<8x128xf32, #tpu.memory_space<vmem>>, %arg3: memref<128x128xf32, #tpu.memory_space<vmem>>, %arg4: memref<1x128xf32, #tpu.memory_space<vmem>>, %arg5: memref<1x128xf32, #tpu.memory_space<vmem>>, %arg6: memref<8x8x128xf32, #tpu.memory_space<vmem>>, %arg7: memref<8x128xf32, #tpu.memory_space<vmem>>, %arg8: memref<8x128xf32, #tpu.memory_space<vmem>>) attributes {dimension_semantics = [#tpu.dimension_semantics<arbitrary>], iteration_bounds = array<i64: 1>, scalar_prefetch = 0 : i64, scratch_operands = 1 : i64, tpu.core_type = #tpu.core_type<tc>, window_params = [{transform_indices = @transform_0, window_bounds = array<i64: 8, 8, 128>}, {pipeline_mode = #tpu.pipeline_mode<synchronous>, transform_indices = @transform_1, window_bounds = array<i64: 8, 128>}, {pipeline_mode = #tpu.pipeline_mode<synchronous>, transform_indices = @transform_2, window_bounds = array<i64: 128, 128>}, {pipeline_mode = #tpu.pipeline_mode<synchronous>, transform_indices = @transform_3, window_bounds = array<i64: 1, 128>}, {pipeline_mode = #tpu.pipeline_mode<synchronous>, transform_indices = @transform_4, window_bounds = array<i64: 1, 128>}, {transform_indices = @transform_5, window_bounds = array<i64: 8, 8, 128>}, {pipeline_mode = #tpu.pipeline_mode<synchronous>, transform_indices = @transform_6, window_bounds = array<i64: 8, 128>}]} {
    %c0_i32 = arith.constant 0 : i32
    %0 = arith.cmpi eq, %arg0, %c0_i32 : i32
    %1 = arith.extui %0 : i1 to i32
    %c0_i32_0 = arith.constant 0 : i32
    %2 = arith.cmpi ne, %1, %c0_i32_0 : i32
    scf.if %2 {
      %c0_77 = arith.constant 0 : index
      %c0_78 = arith.constant 0 : index
      %272 = vector.load %arg2[%c0_77, %c0_78] : memref<8x128xf32, #tpu.memory_space<vmem>>, vector<8x128xf32>
      %c0_79 = arith.constant 0 : index
      %c0_80 = arith.constant 0 : index
      %273 = vector.load %arg8[%c0_79, %c0_80] : memref<8x128xf32, #tpu.memory_space<vmem>>, vector<8x128xf32>
      tpu.vector_store %arg8[%c0_79, %c0_80], %272 {strides = array<i32>} : memref<8x128xf32, #tpu.memory_space<vmem>>, vector<8x128xf32>,
    } else {
    }
    %c0 = arith.constant 0 : index
    %c0_1 = arith.constant 0 : index
    %3 = vector.load %arg3[%c0, %c0_1] : memref<128x128xf32, #tpu.memory_space<vmem>>, vector<128x128xf32>
    %c0_2 = arith.constant 0 : index
    %c0_3 = arith.constant 0 : index
    %4 = vector.load %arg4[%c0_2, %c0_3] : memref<1x128xf32, #tpu.memory_space<vmem>>, vector<1x128xf32>
    %c0_4 = arith.constant 0 : index
    %c0_5 = arith.constant 0 : index
    %5 = vector.load %arg5[%c0_4, %c0_5] : memref<1x128xf32, #tpu.memory_space<vmem>>, vector<1x128xf32>
    %6 = tpu.iota {dimensions = array<i32: 1>} : vector<1x128xi32>
    %c32_i32 = arith.constant 32 : i32
    %7 = vector.broadcast %c32_i32 : i32 to vector<1x128xi32>
    %8 = arith.cmpi slt, %6, %7 : vector<1x128xi32>
    %9 = arith.extui %8 : vector<1x128xi1> to vector<1x128xi32>
    %10 = arith.sitofp %9 : vector<1x128xi32> to vector<1x128xf32>
    %c0_6 = arith.constant 0 : index
    %c0_7 = arith.constant 0 : index
    %11 = vector.load %arg8[%c0_6, %c0_7] : memref<8x128xf32, #tpu.memory_space<vmem>>, vector<8x128xf32>
    %cst = arith.constant 3.125000e-02 : f32
    %c0_i32_8 = arith.constant 0 : i32
    %12 = arith.index_cast %c0_i32_8 : i32 to index
    %c0_9 = arith.constant 0 : index
    %c0_10 = arith.constant 0 : index
    %13 = vector.load %arg1[%12, %c0_9, %c0_10] : memref<8x8x128xf32, #tpu.memory_space<vmem>>, vector<1x8x128xf32>
    %14 = vector.shape_cast %13 : vector<1x8x128xf32> to vector<8x128xf32>
    %cst_11 = arith.constant dense<0.000000e+00> : vector<8x128xf32>
    %15 = tpu.matmul %11, %3, %cst_11 {dimension_numbers = #tpu.dot_dimension_numbers<[1], [0], [0], [1], [0, 0, 1, 1], [], []>} : vector<8x128xf32>, vector<128x128xf32>, vector<8x128xf32> -> vector<8x128xf32>
    %16 = arith.addf %14, %15 : vector<8x128xf32>
    %cst_12 = arith.constant dense<0.000000e+00> : vector<8xf32>
    %17 = vector.multi_reduction <add>, %16, %cst_12 [1] : vector<8x128xf32> to vector<8xf32>
    %18 = vector.shape_cast %17 : vector<8xf32> to vector<8x1xf32>
    %19 = vector.broadcast %cst : f32 to vector<8x1xf32>
    %20 = arith.mulf %18, %19 : vector<8x1xf32>
    %21 = vector.broadcast %20 : vector<8x1xf32> to vector<8x128xf32>
    %22 = arith.subf %16, %21 : vector<8x128xf32>
    %23 = vector.broadcast %10 : vector<1x128xf32> to vector<8x128xf32>
    %24 = arith.mulf %22, %23 : vector<8x128xf32>
    %25 = arith.mulf %24, %24 : vector<8x128xf32>
    %cst_13 = arith.constant dense<0.000000e+00> : vector<8xf32>
    %26 = vector.multi_reduction <add>, %25, %cst_13 [1] : vector<8x128xf32> to vector<8xf32>
    %27 = vector.shape_cast %26 : vector<8xf32> to vector<8x1xf32>
    %28 = vector.broadcast %cst : f32 to vector<8x1xf32>
    %29 = arith.mulf %27, %28 : vector<8x1xf32>
    %cst_14 = arith.constant 9.99999974E-6 : f32
    %30 = vector.broadcast %cst_14 : f32 to vector<8x1xf32>
    %31 = arith.addf %29, %30 : vector<8x1xf32>
    %32 = math.rsqrt %31 : vector<8x1xf32>
    %33 = vector.broadcast %32 : vector<8x1xf32> to vector<8x128xf32>
    %34 = vector.broadcast %4 : vector<1x128xf32> to vector<8x128xf32>
    %35 = arith.mulf %33, %34 : vector<8x128xf32>
    %36 = arith.mulf %22, %35 : vector<8x128xf32>
    %37 = vector.broadcast %5 : vector<1x128xf32> to vector<8x128xf32>
    %38 = arith.addf %36, %37 : vector<8x128xf32>
    %39 = math.tanh %38 : vector<8x128xf32>
    %40 = arith.index_cast %c0_i32_8 : i32 to index
    %c0_15 = arith.constant 0 : index
    %c0_16 = arith.constant 0 : index
    %41 = vector.load %arg6[%40, %c0_15, %c0_16] : memref<8x8x128xf32, #tpu.memory_space<vmem>>, vector<1x8x128xf32>
    %42 = vector.shape_cast %41 : vector<1x8x128xf32> to vector<8x128xf32>
    %43 = vector.shape_cast %39 : vector<8x128xf32> to vector<1x8x128xf32>
    tpu.vector_store %arg6[%40, %c0_15, %c0_16], %43 {strides = array<i32>} : memref<8x8x128xf32, #tpu.memory_space<vmem>>, vector<1x8x128xf32>,
    %c1_i32 = arith.constant 1 : i32
    %44 = arith.index_cast %c1_i32 : i32 to index
    %c0_17 = arith.constant 0 : index
    %c0_18 = arith.constant 0 : index
    %45 = vector.load %arg1[%44, %c0_17, %c0_18] : memref<8x8x128xf32, #tpu.memory_space<vmem>>, vector<1x8x128xf32>
    %46 = vector.shape_cast %45 : vector<1x8x128xf32> to vector<8x128xf32>
    %cst_19 = arith.constant dense<0.000000e+00> : vector<8x128xf32>
    %47 = tpu.matmul %39, %3, %cst_19 {dimension_numbers = #tpu.dot_dimension_numbers<[1], [0], [0], [1], [0, 0, 1, 1], [], []>} : vector<8x128xf32>, vector<128x128xf32>, vector<8x128xf32> -> vector<8x128xf32>
    %48 = arith.addf %46, %47 : vector<8x128xf32>
    %cst_20 = arith.constant dense<0.000000e+00> : vector<8xf32>
    %49 = vector.multi_reduction <add>, %48, %cst_20 [1] : vector<8x128xf32> to vector<8xf32>
    %50 = vector.shape_cast %49 : vector<8xf32> to vector<8x1xf32>
    %51 = vector.broadcast %cst : f32 to vector<8x1xf32>
    %52 = arith.mulf %50, %51 : vector<8x1xf32>
    %53 = vector.broadcast %52 : vector<8x1xf32> to vector<8x128xf32>
    %54 = arith.subf %48, %53 : vector<8x128xf32>
    %55 = vector.broadcast %10 : vector<1x128xf32> to vector<8x128xf32>
    %56 = arith.mulf %54, %55 : vector<8x128xf32>
    %57 = arith.mulf %56, %56 : vector<8x128xf32>
    %cst_21 = arith.constant dense<0.000000e+00> : vector<8xf32>
    %58 = vector.multi_reduction <add>, %57, %cst_21 [1] : vector<8x128xf32> to vector<8xf32>
    %59 = vector.shape_cast %58 : vector<8xf32> to vector<8x1xf32>
    %60 = vector.broadcast %cst : f32 to vector<8x1xf32>
    %61 = arith.mulf %59, %60 : vector<8x1xf32>
    %cst_22 = arith.constant 9.99999974E-6 : f32
    %62 = vector.broadcast %cst_22 : f32 to vector<8x1xf32>
    %63 = arith.addf %61, %62 : vector<8x1xf32>
    %64 = math.rsqrt %63 : vector<8x1xf32>
    %65 = vector.broadcast %64 : vector<8x1xf32> to vector<8x128xf32>
    %66 = vector.broadcast %4 : vector<1x128xf32> to vector<8x128xf32>
    %67 = arith.mulf %65, %66 : vector<8x128xf32>
    %68 = arith.mulf %54, %67 : vector<8x128xf32>
    %69 = vector.broadcast %5 : vector<1x128xf32> to vector<8x128xf32>
    %70 = arith.addf %68, %69 : vector<8x128xf32>
    %71 = math.tanh %70 : vector<8x128xf32>
    %72 = arith.index_cast %c1_i32 : i32 to index
    %c0_23 = arith.constant 0 : index
    %c0_24 = arith.constant 0 : index
    %73 = vector.load %arg6[%72, %c0_23, %c0_24] : memref<8x8x128xf32, #tpu.memory_space<vmem>>, vector<1x8x128xf32>
    %74 = vector.shape_cast %73 : vector<1x8x128xf32> to vector<8x128xf32>
    %75 = vector.shape_cast %71 : vector<8x128xf32> to vector<1x8x128xf32>
    tpu.vector_store %arg6[%72, %c0_23, %c0_24], %75 {strides = array<i32>} : memref<8x8x128xf32, #tpu.memory_space<vmem>>, vector<1x8x128xf32>,
    %c2_i32 = arith.constant 2 : i32
    %76 = arith.index_cast %c2_i32 : i32 to index
    %c0_25 = arith.constant 0 : index
    %c0_26 = arith.constant 0 : index
    %77 = vector.load %arg1[%76, %c0_25, %c0_26] : memref<8x8x128xf32, #tpu.memory_space<vmem>>, vector<1x8x128xf32>
    %78 = vector.shape_cast %77 : vector<1x8x128xf32> to vector<8x128xf32>
    %cst_27 = arith.constant dense<0.000000e+00> : vector<8x128xf32>
    %79 = tpu.matmul %71, %3, %cst_27 {dimension_numbers = #tpu.dot_dimension_numbers<[1], [0], [0], [1], [0, 0, 1, 1], [], []>} : vector<8x128xf32>, vector<128x128xf32>, vector<8x128xf32> -> vector<8x128xf32>
    %80 = arith.addf %78, %79 : vector<8x128xf32>
    %cst_28 = arith.constant dense<0.000000e+00> : vector<8xf32>
    %81 = vector.multi_reduction <add>, %80, %cst_28 [1] : vector<8x128xf32> to vector<8xf32>
    %82 = vector.shape_cast %81 : vector<8xf32> to vector<8x1xf32>
    %83 = vector.broadcast %cst : f32 to vector<8x1xf32>
    %84 = arith.mulf %82, %83 : vector<8x1xf32>
    %85 = vector.broadcast %84 : vector<8x1xf32> to vector<8x128xf32>
    %86 = arith.subf %80, %85 : vector<8x128xf32>
    %87 = vector.broadcast %10 : vector<1x128xf32> to vector<8x128xf32>
    %88 = arith.mulf %86, %87 : vector<8x128xf32>
    %89 = arith.mulf %88, %88 : vector<8x128xf32>
    %cst_29 = arith.constant dense<0.000000e+00> : vector<8xf32>
    %90 = vector.multi_reduction <add>, %89, %cst_29 [1] : vector<8x128xf32> to vector<8xf32>
    %91 = vector.shape_cast %90 : vector<8xf32> to vector<8x1xf32>
    %92 = vector.broadcast %cst : f32 to vector<8x1xf32>
    %93 = arith.mulf %91, %92 : vector<8x1xf32>
    %cst_30 = arith.constant 9.99999974E-6 : f32
    %94 = vector.broadcast %cst_30 : f32 to vector<8x1xf32>
    %95 = arith.addf %93, %94 : vector<8x1xf32>
    %96 = math.rsqrt %95 : vector<8x1xf32>
    %97 = vector.broadcast %96 : vector<8x1xf32> to vector<8x128xf32>
    %98 = vector.broadcast %4 : vector<1x128xf32> to vector<8x128xf32>
    %99 = arith.mulf %97, %98 : vector<8x128xf32>
    %100 = arith.mulf %86, %99 : vector<8x128xf32>
    %101 = vector.broadcast %5 : vector<1x128xf32> to vector<8x128xf32>
    %102 = arith.addf %100, %101 : vector<8x128xf32>
    %103 = math.tanh %102 : vector<8x128xf32>
    %104 = arith.index_cast %c2_i32 : i32 to index
    %c0_31 = arith.constant 0 : index
    %c0_32 = arith.constant 0 : index
    %105 = vector.load %arg6[%104, %c0_31, %c0_32] : memref<8x8x128xf32, #tpu.memory_space<vmem>>, vector<1x8x128xf32>
    %106 = vector.shape_cast %105 : vector<1x8x128xf32> to vector<8x128xf32>
    %107 = vector.shape_cast %103 : vector<8x128xf32> to vector<1x8x128xf32>
    tpu.vector_store %arg6[%104, %c0_31, %c0_32], %107 {strides = array<i32>} : memref<8x8x128xf32, #tpu.memory_space<vmem>>, vector<1x8x128xf32>,
    %c3_i32 = arith.constant 3 : i32
    %108 = arith.index_cast %c3_i32 : i32 to index
    %c0_33 = arith.constant 0 : index
    %c0_34 = arith.constant 0 : index
    %109 = vector.load %arg1[%108, %c0_33, %c0_34] : memref<8x8x128xf32, #tpu.memory_space<vmem>>, vector<1x8x128xf32>
    %110 = vector.shape_cast %109 : vector<1x8x128xf32> to vector<8x128xf32>
    %cst_35 = arith.constant dense<0.000000e+00> : vector<8x128xf32>
    %111 = tpu.matmul %103, %3, %cst_35 {dimension_numbers = #tpu.dot_dimension_numbers<[1], [0], [0], [1], [0, 0, 1, 1], [], []>} : vector<8x128xf32>, vector<128x128xf32>, vector<8x128xf32> -> vector<8x128xf32>
    %112 = arith.addf %110, %111 : vector<8x128xf32>
    %cst_36 = arith.constant dense<0.000000e+00> : vector<8xf32>
    %113 = vector.multi_reduction <add>, %112, %cst_36 [1] : vector<8x128xf32> to vector<8xf32>
    %114 = vector.shape_cast %113 : vector<8xf32> to vector<8x1xf32>
    %115 = vector.broadcast %cst : f32 to vector<8x1xf32>
    %116 = arith.mulf %114, %115 : vector<8x1xf32>
    %117 = vector.broadcast %116 : vector<8x1xf32> to vector<8x128xf32>
    %118 = arith.subf %112, %117 : vector<8x128xf32>
    %119 = vector.broadcast %10 : vector<1x128xf32> to vector<8x128xf32>
    %120 = arith.mulf %118, %119 : vector<8x128xf32>
    %121 = arith.mulf %120, %120 : vector<8x128xf32>
    %cst_37 = arith.constant dense<0.000000e+00> : vector<8xf32>
    %122 = vector.multi_reduction <add>, %121, %cst_37 [1] : vector<8x128xf32> to vector<8xf32>
    %123 = vector.shape_cast %122 : vector<8xf32> to vector<8x1xf32>
    %124 = vector.broadcast %cst : f32 to vector<8x1xf32>
    %125 = arith.mulf %123, %124 : vector<8x1xf32>
    %cst_38 = arith.constant 9.99999974E-6 : f32
    %126 = vector.broadcast %cst_38 : f32 to vector<8x1xf32>
    %127 = arith.addf %125, %126 : vector<8x1xf32>
    %128 = math.rsqrt %127 : vector<8x1xf32>
    %129 = vector.broadcast %128 : vector<8x1xf32> to vector<8x128xf32>
    %130 = vector.broadcast %4 : vector<1x128xf32> to vector<8x128xf32>
    %131 = arith.mulf %129, %130 : vector<8x128xf32>
    %132 = arith.mulf %118, %131 : vector<8x128xf32>
    %133 = vector.broadcast %5 : vector<1x128xf32> to vector<8x128xf32>
    %134 = arith.addf %132, %133 : vector<8x128xf32>
    %135 = math.tanh %134 : vector<8x128xf32>
    %136 = arith.index_cast %c3_i32 : i32 to index
    %c0_39 = arith.constant 0 : index
    %c0_40 = arith.constant 0 : index
    %137 = vector.load %arg6[%136, %c0_39, %c0_40] : memref<8x8x128xf32, #tpu.memory_space<vmem>>, vector<1x8x128xf32>
    %138 = vector.shape_cast %137 : vector<1x8x128xf32> to vector<8x128xf32>
    %139 = vector.shape_cast %135 : vector<8x128xf32> to vector<1x8x128xf32>
    tpu.vector_store %arg6[%136, %c0_39, %c0_40], %139 {strides = array<i32>} : memref<8x8x128xf32, #tpu.memory_space<vmem>>, vector<1x8x128xf32>,
    %c4_i32 = arith.constant 4 : i32
    %140 = arith.index_cast %c4_i32 : i32 to index
    %c0_41 = arith.constant 0 : index
    %c0_42 = arith.constant 0 : index
    %141 = vector.load %arg1[%140, %c0_41, %c0_42] : memref<8x8x128xf32, #tpu.memory_space<vmem>>, vector<1x8x128xf32>
    %142 = vector.shape_cast %141 : vector<1x8x128xf32> to vector<8x128xf32>
    %cst_43 = arith.constant dense<0.000000e+00> : vector<8x128xf32>
    %143 = tpu.matmul %135, %3, %cst_43 {dimension_numbers = #tpu.dot_dimension_numbers<[1], [0], [0], [1], [0, 0, 1, 1], [], []>} : vector<8x128xf32>, vector<128x128xf32>, vector<8x128xf32> -> vector<8x128xf32>
    %144 = arith.addf %142, %143 : vector<8x128xf32>
    %cst_44 = arith.constant dense<0.000000e+00> : vector<8xf32>
    %145 = vector.multi_reduction <add>, %144, %cst_44 [1] : vector<8x128xf32> to vector<8xf32>
    %146 = vector.shape_cast %145 : vector<8xf32> to vector<8x1xf32>
    %147 = vector.broadcast %cst : f32 to vector<8x1xf32>
    %148 = arith.mulf %146, %147 : vector<8x1xf32>
    %149 = vector.broadcast %148 : vector<8x1xf32> to vector<8x128xf32>
    %150 = arith.subf %144, %149 : vector<8x128xf32>
    %151 = vector.broadcast %10 : vector<1x128xf32> to vector<8x128xf32>
    %152 = arith.mulf %150, %151 : vector<8x128xf32>
    %153 = arith.mulf %152, %152 : vector<8x128xf32>
    %cst_45 = arith.constant dense<0.000000e+00> : vector<8xf32>
    %154 = vector.multi_reduction <add>, %153, %cst_45 [1] : vector<8x128xf32> to vector<8xf32>
    %155 = vector.shape_cast %154 : vector<8xf32> to vector<8x1xf32>
    %156 = vector.broadcast %cst : f32 to vector<8x1xf32>
    %157 = arith.mulf %155, %156 : vector<8x1xf32>
    %cst_46 = arith.constant 9.99999974E-6 : f32
    %158 = vector.broadcast %cst_46 : f32 to vector<8x1xf32>
    %159 = arith.addf %157, %158 : vector<8x1xf32>
    %160 = math.rsqrt %159 : vector<8x1xf32>
    %161 = vector.broadcast %160 : vector<8x1xf32> to vector<8x128xf32>
    %162 = vector.broadcast %4 : vector<1x128xf32> to vector<8x128xf32>
    %163 = arith.mulf %161, %162 : vector<8x128xf32>
    %164 = arith.mulf %150, %163 : vector<8x128xf32>
    %165 = vector.broadcast %5 : vector<1x128xf32> to vector<8x128xf32>
    %166 = arith.addf %164, %165 : vector<8x128xf32>
    %167 = math.tanh %166 : vector<8x128xf32>
    %168 = arith.index_cast %c4_i32 : i32 to index
    %c0_47 = arith.constant 0 : index
    %c0_48 = arith.constant 0 : index
    %169 = vector.load %arg6[%168, %c0_47, %c0_48] : memref<8x8x128xf32, #tpu.memory_space<vmem>>, vector<1x8x128xf32>
    %170 = vector.shape_cast %169 : vector<1x8x128xf32> to vector<8x128xf32>
    %171 = vector.shape_cast %167 : vector<8x128xf32> to vector<1x8x128xf32>
    tpu.vector_store %arg6[%168, %c0_47, %c0_48], %171 {strides = array<i32>} : memref<8x8x128xf32, #tpu.memory_space<vmem>>, vector<1x8x128xf32>,
    %c5_i32 = arith.constant 5 : i32
    %172 = arith.index_cast %c5_i32 : i32 to index
    %c0_49 = arith.constant 0 : index
    %c0_50 = arith.constant 0 : index
    %173 = vector.load %arg1[%172, %c0_49, %c0_50] : memref<8x8x128xf32, #tpu.memory_space<vmem>>, vector<1x8x128xf32>
    %174 = vector.shape_cast %173 : vector<1x8x128xf32> to vector<8x128xf32>
    %cst_51 = arith.constant dense<0.000000e+00> : vector<8x128xf32>
    %175 = tpu.matmul %167, %3, %cst_51 {dimension_numbers = #tpu.dot_dimension_numbers<[1], [0], [0], [1], [0, 0, 1, 1], [], []>} : vector<8x128xf32>, vector<128x128xf32>, vector<8x128xf32> -> vector<8x128xf32>
    %176 = arith.addf %174, %175 : vector<8x128xf32>
    %cst_52 = arith.constant dense<0.000000e+00> : vector<8xf32>
    %177 = vector.multi_reduction <add>, %176, %cst_52 [1] : vector<8x128xf32> to vector<8xf32>
    %178 = vector.shape_cast %177 : vector<8xf32> to vector<8x1xf32>
    %179 = vector.broadcast %cst : f32 to vector<8x1xf32>
    %180 = arith.mulf %178, %179 : vector<8x1xf32>
    %181 = vector.broadcast %180 : vector<8x1xf32> to vector<8x128xf32>
    %182 = arith.subf %176, %181 : vector<8x128xf32>
    %183 = vector.broadcast %10 : vector<1x128xf32> to vector<8x128xf32>
    %184 = arith.mulf %182, %183 : vector<8x128xf32>
    %185 = arith.mulf %184, %184 : vector<8x128xf32>
    %cst_53 = arith.constant dense<0.000000e+00> : vector<8xf32>
    %186 = vector.multi_reduction <add>, %185, %cst_53 [1] : vector<8x128xf32> to vector<8xf32>
    %187 = vector.shape_cast %186 : vector<8xf32> to vector<8x1xf32>
    %188 = vector.broadcast %cst : f32 to vector<8x1xf32>
    %189 = arith.mulf %187, %188 : vector<8x1xf32>
    %cst_54 = arith.constant 9.99999974E-6 : f32
    %190 = vector.broadcast %cst_54 : f32 to vector<8x1xf32>
    %191 = arith.addf %189, %190 : vector<8x1xf32>
    %192 = math.rsqrt %191 : vector<8x1xf32>
    %193 = vector.broadcast %192 : vector<8x1xf32> to vector<8x128xf32>
    %194 = vector.broadcast %4 : vector<1x128xf32> to vector<8x128xf32>
    %195 = arith.mulf %193, %194 : vector<8x128xf32>
    %196 = arith.mulf %182, %195 : vector<8x128xf32>
    %197 = vector.broadcast %5 : vector<1x128xf32> to vector<8x128xf32>
    %198 = arith.addf %196, %197 : vector<8x128xf32>
    %199 = math.tanh %198 : vector<8x128xf32>
    %200 = arith.index_cast %c5_i32 : i32 to index
    %c0_55 = arith.constant 0 : index
    %c0_56 = arith.constant 0 : index
    %201 = vector.load %arg6[%200, %c0_55, %c0_56] : memref<8x8x128xf32, #tpu.memory_space<vmem>>, vector<1x8x128xf32>
    %202 = vector.shape_cast %201 : vector<1x8x128xf32> to vector<8x128xf32>
    %203 = vector.shape_cast %199 : vector<8x128xf32> to vector<1x8x128xf32>
    tpu.vector_store %arg6[%200, %c0_55, %c0_56], %203 {strides = array<i32>} : memref<8x8x128xf32, #tpu.memory_space<vmem>>, vector<1x8x128xf32>,
    %c6_i32 = arith.constant 6 : i32
    %204 = arith.index_cast %c6_i32 : i32 to index
    %c0_57 = arith.constant 0 : index
    %c0_58 = arith.constant 0 : index
    %205 = vector.load %arg1[%204, %c0_57, %c0_58] : memref<8x8x128xf32, #tpu.memory_space<vmem>>, vector<1x8x128xf32>
    %206 = vector.shape_cast %205 : vector<1x8x128xf32> to vector<8x128xf32>
    %cst_59 = arith.constant dense<0.000000e+00> : vector<8x128xf32>
    %207 = tpu.matmul %199, %3, %cst_59 {dimension_numbers = #tpu.dot_dimension_numbers<[1], [0], [0], [1], [0, 0, 1, 1], [], []>} : vector<8x128xf32>, vector<128x128xf32>, vector<8x128xf32> -> vector<8x128xf32>
    %208 = arith.addf %206, %207 : vector<8x128xf32>
    %cst_60 = arith.constant dense<0.000000e+00> : vector<8xf32>
    %209 = vector.multi_reduction <add>, %208, %cst_60 [1] : vector<8x128xf32> to vector<8xf32>
    %210 = vector.shape_cast %209 : vector<8xf32> to vector<8x1xf32>
    %211 = vector.broadcast %cst : f32 to vector<8x1xf32>
    %212 = arith.mulf %210, %211 : vector<8x1xf32>
    %213 = vector.broadcast %212 : vector<8x1xf32> to vector<8x128xf32>
    %214 = arith.subf %208, %213 : vector<8x128xf32>
    %215 = vector.broadcast %10 : vector<1x128xf32> to vector<8x128xf32>
    %216 = arith.mulf %214, %215 : vector<8x128xf32>
    %217 = arith.mulf %216, %216 : vector<8x128xf32>
    %cst_61 = arith.constant dense<0.000000e+00> : vector<8xf32>
    %218 = vector.multi_reduction <add>, %217, %cst_61 [1] : vector<8x128xf32> to vector<8xf32>
    %219 = vector.shape_cast %218 : vector<8xf32> to vector<8x1xf32>
    %220 = vector.broadcast %cst : f32 to vector<8x1xf32>
    %221 = arith.mulf %219, %220 : vector<8x1xf32>
    %cst_62 = arith.constant 9.99999974E-6 : f32
    %222 = vector.broadcast %cst_62 : f32 to vector<8x1xf32>
    %223 = arith.addf %221, %222 : vector<8x1xf32>
    %224 = math.rsqrt %223 : vector<8x1xf32>
    %225 = vector.broadcast %224 : vector<8x1xf32> to vector<8x128xf32>
    %226 = vector.broadcast %4 : vector<1x128xf32> to vector<8x128xf32>
    %227 = arith.mulf %225, %226 : vector<8x128xf32>
    %228 = arith.mulf %214, %227 : vector<8x128xf32>
    %229 = vector.broadcast %5 : vector<1x128xf32> to vector<8x128xf32>
    %230 = arith.addf %228, %229 : vector<8x128xf32>
    %231 = math.tanh %230 : vector<8x128xf32>
    %232 = arith.index_cast %c6_i32 : i32 to index
    %c0_63 = arith.constant 0 : index
    %c0_64 = arith.constant 0 : index
    %233 = vector.load %arg6[%232, %c0_63, %c0_64] : memref<8x8x128xf32, #tpu.memory_space<vmem>>, vector<1x8x128xf32>
    %234 = vector.shape_cast %233 : vector<1x8x128xf32> to vector<8x128xf32>
    %235 = vector.shape_cast %231 : vector<8x128xf32> to vector<1x8x128xf32>
    tpu.vector_store %arg6[%232, %c0_63, %c0_64], %235 {strides = array<i32>} : memref<8x8x128xf32, #tpu.memory_space<vmem>>, vector<1x8x128xf32>,
    %c7_i32 = arith.constant 7 : i32
    %236 = arith.index_cast %c7_i32 : i32 to index
    %c0_65 = arith.constant 0 : index
    %c0_66 = arith.constant 0 : index
    %237 = vector.load %arg1[%236, %c0_65, %c0_66] : memref<8x8x128xf32, #tpu.memory_space<vmem>>, vector<1x8x128xf32>
    %238 = vector.shape_cast %237 : vector<1x8x128xf32> to vector<8x128xf32>
    %cst_67 = arith.constant dense<0.000000e+00> : vector<8x128xf32>
    %239 = tpu.matmul %231, %3, %cst_67 {dimension_numbers = #tpu.dot_dimension_numbers<[1], [0], [0], [1], [0, 0, 1, 1], [], []>} : vector<8x128xf32>, vector<128x128xf32>, vector<8x128xf32> -> vector<8x128xf32>
    %240 = arith.addf %238, %239 : vector<8x128xf32>
    %cst_68 = arith.constant dense<0.000000e+00> : vector<8xf32>
    %241 = vector.multi_reduction <add>, %240, %cst_68 [1] : vector<8x128xf32> to vector<8xf32>
    %242 = vector.shape_cast %241 : vector<8xf32> to vector<8x1xf32>
    %243 = vector.broadcast %cst : f32 to vector<8x1xf32>
    %244 = arith.mulf %242, %243 : vector<8x1xf32>
    %245 = vector.broadcast %244 : vector<8x1xf32> to vector<8x128xf32>
    %246 = arith.subf %240, %245 : vector<8x128xf32>
    %247 = vector.broadcast %10 : vector<1x128xf32> to vector<8x128xf32>
    %248 = arith.mulf %246, %247 : vector<8x128xf32>
    %249 = arith.mulf %248, %248 : vector<8x128xf32>
    %cst_69 = arith.constant dense<0.000000e+00> : vector<8xf32>
    %250 = vector.multi_reduction <add>, %249, %cst_69 [1] : vector<8x128xf32> to vector<8xf32>
    %251 = vector.shape_cast %250 : vector<8xf32> to vector<8x1xf32>
    %252 = vector.broadcast %cst : f32 to vector<8x1xf32>
    %253 = arith.mulf %251, %252 : vector<8x1xf32>
    %cst_70 = arith.constant 9.99999974E-6 : f32
    %254 = vector.broadcast %cst_70 : f32 to vector<8x1xf32>
    %255 = arith.addf %253, %254 : vector<8x1xf32>
    %256 = math.rsqrt %255 : vector<8x1xf32>
    %257 = vector.broadcast %256 : vector<8x1xf32> to vector<8x128xf32>
    %258 = vector.broadcast %4 : vector<1x128xf32> to vector<8x128xf32>
    %259 = arith.mulf %257, %258 : vector<8x128xf32>
    %260 = arith.mulf %246, %259 : vector<8x128xf32>
    %261 = vector.broadcast %5 : vector<1x128xf32> to vector<8x128xf32>
    %262 = arith.addf %260, %261 : vector<8x128xf32>
    %263 = math.tanh %262 : vector<8x128xf32>
    %264 = arith.index_cast %c7_i32 : i32 to index
    %c0_71 = arith.constant 0 : index
    %c0_72 = arith.constant 0 : index
    %265 = vector.load %arg6[%264, %c0_71, %c0_72] : memref<8x8x128xf32, #tpu.memory_space<vmem>>, vector<1x8x128xf32>
    %266 = vector.shape_cast %265 : vector<1x8x128xf32> to vector<8x128xf32>
    %267 = vector.shape_cast %263 : vector<8x128xf32> to vector<1x8x128xf32>
    tpu.vector_store %arg6[%264, %c0_71, %c0_72], %267 {strides = array<i32>} : memref<8x8x128xf32, #tpu.memory_space<vmem>>, vector<1x8x128xf32>,
    %c8_i32 = arith.constant 8 : i32
    %c0_73 = arith.constant 0 : index
    %c0_74 = arith.constant 0 : index
    %268 = vector.load %arg8[%c0_73, %c0_74] : memref<8x128xf32, #tpu.memory_space<vmem>>, vector<8x128xf32>
    tpu.vector_store %arg8[%c0_73, %c0_74], %263 {strides = array<i32>} : memref<8x128xf32, #tpu.memory_space<vmem>>, vector<8x128xf32>,
    %c0_i32_75 = arith.constant 0 : i32
    %269 = arith.cmpi eq, %arg0, %c0_i32_75 : i32
    %270 = arith.extui %269 : i1 to i32
    %c0_i32_76 = arith.constant 0 : i32
    %271 = arith.cmpi ne, %270, %c0_i32_76 : i32
    scf.if %271 {
      %c0_77 = arith.constant 0 : index
      %c0_78 = arith.constant 0 : index
      %272 = vector.load %arg7[%c0_77, %c0_78] : memref<8x128xf32, #tpu.memory_space<vmem>>, vector<8x128xf32>
      tpu.vector_store %arg7[%c0_77, %c0_78], %263 {strides = array<i32>} : memref<8x128xf32, #tpu.memory_space<vmem>>, vector<8x128xf32>,
    } else {
    }
    return
  }
  func.func @transform_0(%arg0: i32) -> (i32, i32, i32) {
    %c0_i32 = arith.constant 0 : i32
    %c0_i32_0 = arith.constant 0 : i32
    %c0_i32_1 = arith.constant 0 : i32
    return %arg0, %c0_i32, %c0_i32_0 : i32, i32, i32
  }
  func.func @transform_1(%arg0: i32) -> (i32, i32) {
    %c0_i32 = arith.constant 0 : i32
    %c0_i32_0 = arith.constant 0 : i32
    %c0_i32_1 = arith.constant 0 : i32
    return %c0_i32, %c0_i32_0 : i32, i32
  }
  func.func @transform_2(%arg0: i32) -> (i32, i32) {
    %c0_i32 = arith.constant 0 : i32
    %c0_i32_0 = arith.constant 0 : i32
    %c0_i32_1 = arith.constant 0 : i32
    return %c0_i32, %c0_i32_0 : i32, i32
  }
  func.func @transform_3(%arg0: i32) -> (i32, i32) {
    %c0_i32 = arith.constant 0 : i32
    %c0_i32_0 = arith.constant 0 : i32
    %c0_i32_1 = arith.constant 0 : i32
    return %c0_i32, %c0_i32_0 : i32, i32
  }
  func.func @transform_4(%arg0: i32) -> (i32, i32) {
    %c0_i32 = arith.constant 0 : i32
    %c0_i32_0 = arith.constant 0 : i32
    %c0_i32_1 = arith.constant 0 : i32
    return %c0_i32, %c0_i32_0 : i32, i32
  }
  func.func @transform_5(%arg0: i32) -> (i32, i32, i32) {
    %c0_i32 = arith.constant 0 : i32
    %c0_i32_0 = arith.constant 0 : i32
    %c0_i32_1 = arith.constant 0 : i32
    return %arg0, %c0_i32, %c0_i32_0 : i32, i32, i32
  }
  func.func @transform_6(%arg0: i32) -> (i32, i32) {
    %c0_i32 = arith.constant 0 : i32
    %c0_i32_0 = arith.constant 0 : i32
    %c0_i32_1 = arith.constant 0 : i32
    return %c0_i32, %c0_i32_0 : i32, i32
  }
}

</mosaic_0001>

<llo_original>
// kernel: rnn_layer_forward.1
$region0: #{rnn_layer_forward.1}
  #allocation0 [shape = 'u32[]', space=smem, size = 0x4, offset = 0x4, fixed_abs, tag = 'smem constant byte address 0x4 - core index']
  #allocation1 [shape = 'u32[144,128]{1,0:T(1,128)}', space=vmem, size = 0x12000, scoped, tag = 'internal scratch']
  #allocation2 [shape = 'f32[8,128]{1,0:T(8,128)}', space=vmem, size = 0x1000, scoped, tag = 'scratch operand']
  %s0 = inlined_call_operand.vmem [shape: f32[8,8,128], index: 0, kind: input, shape index: {}]
  %s1 = inlined_call_operand.vmem [shape: f32[8,128], index: 1, kind: input, shape index: {}]
  %s2 = inlined_call_operand.vmem [shape: f32[128,128], index: 2, kind: input, shape index: {}]
  %s3 = inlined_call_operand.vmem [shape: f32[1,128], index: 3, kind: input, shape index: {}]
  %s4 = inlined_call_operand.vmem [shape: f32[1,128], index: 4, kind: input, shape index: {}]
  %s5 = inlined_call_operand.vmem [shape: f32[8,8,128], index: 5, kind: output, shape index: {0}]
  %s6 = inlined_call_operand.vmem [shape: f32[8,128], index: 6, kind: output, shape index: {1}]
  %7 = xla_tuple %s5, %s6
  %s8 = sld [smem:[#allocation0]]
  $region46: #{rnn_layer_forward.1} parent=0
    _
  %s10 = ssub.s32 1, %s8
  %s11 = scalar_select 0, %s10, %s8
  // Predicated region
  $region2: #{rnn_layer_forward.1} parent=0 // pred_check
    _
  $region3: #{rnn_layer_forward.1} parent=0 // pred_check_branch
    %13 = sbr.rel (0) target = $region5
  $region4: #{rnn_layer_forward.1} parent=0 // pred_region
    _
  $region5: #{rnn_layer_forward.1} parent=0 // pred_fallthru
    _
  // Predicated region
  $region6: #{rnn_layer_forward.1} parent=0 // pred_check
    _
  $region7: #{rnn_layer_forward.1} parent=0 // pred_check_branch
    %15 = sbr.rel (0) target = $region9
  $region8: #{rnn_layer_forward.1} parent=0 // pred_region
    _
  $region9: #{rnn_layer_forward.1} parent=0 // pred_fallthru
    _
  // Predicated region
  $region10: #{rnn_layer_forward.1} parent=0 // pred_check
    _
  $region11: #{rnn_layer_forward.1} parent=0 // pred_check_branch
    %17 = sbr.rel (0) target = $region13
  $region12: #{rnn_layer_forward.1} parent=0 // pred_region
    _
  $region13: #{rnn_layer_forward.1} parent=0 // pred_fallthru
    _
  // Predicated region
  $region14: #{rnn_layer_forward.1} parent=0 // pred_check
    _
  $region15: #{rnn_layer_forward.1} parent=0 // pred_check_branch
    %19 = sbr.rel (0) target = $region17
  $region16: #{rnn_layer_forward.1} parent=0 // pred_region
    _
  $region17: #{rnn_layer_forward.1} parent=0 // pred_fallthru
    _
  // Predicated region
  $region18: #{rnn_layer_forward.1} parent=0 // pred_check
    _
  $region19: #{rnn_layer_forward.1} parent=0 // pred_check_branch
    %21 = sbr.rel (0) target = $region21
  $region20: #{rnn_layer_forward.1} parent=0 // pred_region
    _
  $region21: #{rnn_layer_forward.1} parent=0 // pred_fallthru
    _
  %p22 = scmp.eq.s32.totalorder 0, 0
  // Predicated region
  $region22: #{rnn_layer_forward.1} parent=0 // pred_check
    %p23 = pneg %p22
  $region23: #{rnn_layer_forward.1} parent=0 // pred_check_branch
    %25 = sbr.rel (%p23) target = $region25
  $region24: #{rnn_layer_forward.1} parent=0 // pred_region
    %v26 = vld [vmem:[%s1] sm:$0xff]
    %27 = vst [vmem:[#allocation2] sm:$0xff] %v26
  $region25: #{rnn_layer_forward.1} parent=0 // pred_fallthru
    _
  %v28 = vld [vmem:[%s2] sm:$0xff]
  %v29 = vld [vmem:[%s2 + $0x8] sm:$0xff]
  %v30 = vld [vmem:[%s2 + $0x10] sm:$0xff]
  %v31 = vld [vmem:[%s2 + $0x18] sm:$0xff]
  %v32 = vld [vmem:[%s2 + $0x20] sm:$0xff]
  %v33 = vld [vmem:[%s2 + $0x28] sm:$0xff]
  %v34 = vld [vmem:[%s2 + $0x30] sm:$0xff]
  %v35 = vld [vmem:[%s2 + $0x38] sm:$0xff]
  %v36 = vld [vmem:[%s2 + $0x40] sm:$0xff]
  %v37 = vld [vmem:[%s2 + $0x48] sm:$0xff]
  %v38 = vld [vmem:[%s2 + $0x50] sm:$0xff]
  %v39 = vld [vmem:[%s2 + $0x58] sm:$0xff]
  %v40 = vld [vmem:[%s2 + $0x60] sm:$0xff]
  %v41 = vld [vmem:[%s2 + $0x68] sm:$0xff]
  %v42 = vld [vmem:[%s2 + $0x70] sm:$0xff]
  %v43 = vld [vmem:[%s2 + $0x78] sm:$0xff]
  %v44 = vld [vmem:[%s3] sm:$0x1]
  %v45 = vld [vmem:[%s4] sm:$0x1]
  %v46 = vlaneseq
  %v47 = vand.u32 %v46, 127
  %vm48 = vcmp.lt.s32.totalorder %v47, 32
  %v49 = vsel %vm48, 1, 0
  %v50 = vcvt.s32.f32 %v49
  %v51 = vld [vmem:[#allocation2] sm:$0xff]
  %v52 = vld [vmem:[%s0] sm:$0xff]
  %53 = vmatprep.subr.mxu0 0.0
  %54 = vmatpush1.msra.mxu0 %v43
  %55 = vmatprep.subr.mxu0 0.0
  %56 = vmatpush1.msra.mxu0 %v42
  %57 = vmatprep.subr.mxu0 0.0
  %58 = vmatpush1.msra.mxu0 %v41
  %59 = vmatprep.subr.mxu0 0.0
  %60 = vmatpush1.msra.mxu0 %v40
  %61 = vmatprep.subr.mxu0 0.0
  %62 = vmatpush1.msra.mxu0 %v39
  %63 = vmatprep.subr.mxu0 0.0
  %64 = vmatpush1.msra.mxu0 %v38
  %65 = vmatprep.subr.mxu0 0.0
  %66 = vmatpush1.msra.mxu0 %v37
  %67 = vmatprep.subr.mxu0 0.0
  %68 = vmatpush1.msra.mxu0 %v36
  %69 = vmatprep.subr.mxu0 0.0
  %70 = vmatpush1.msra.mxu0 %v35
  %71 = vmatprep.subr.mxu0 0.0
  %72 = vmatpush1.msra.mxu0 %v34
  %73 = vmatprep.subr.mxu0 0.0
  %74 = vmatpush1.msra.mxu0 %v33
  %75 = vmatprep.subr.mxu0 0.0
  %76 = vmatpush1.msra.mxu0 %v32
  %77 = vmatprep.subr.mxu0 0.0
  %78 = vmatpush1.msra.mxu0 %v31
  %79 = vmatprep.subr.mxu0 0.0
  %80 = vmatpush1.msra.mxu0 %v30
  %81 = vmatprep.subr.mxu0 0.0
  %82 = vmatpush1.msra.mxu0 %v29
  %83 = vmatprep.subr.mxu0 0.0
  %84 = vmatpush1.msra.mxu0 %v28
  %85 = vmatprep.subr.mxu0 0.0
  %86 = vmatpush2.msra.mxu0 0.0
  %87 = vmatprep.subr.mxu0 0.0
  %88 = vmatpush2.msra.mxu0 0.0
  %89 = vmatprep.subr.mxu0 0.0
  %90 = vmatpush2.msra.mxu0 0.0
  %91 = vmatprep.subr.mxu0 0.0
  %92 = vmatpush2.msra.mxu0 0.0
  %93 = vmatprep.subr.mxu0 0.0
  %94 = vmatpush2.msra.mxu0 0.0
  %95 = vmatprep.subr.mxu0 0.0
  %96 = vmatpush2.msra.mxu0 0.0
  %97 = vmatprep.subr.mxu0 0.0
  %98 = vmatpush2.msra.mxu0 0.0
  %99 = vmatprep.subr.mxu0 0.0
  %100 = vmatpush2.msra.mxu0 0.0
  %101 = vmatprep.subr.mxu0 0.0
  %102 = vmatpush2.msra.mxu0 0.0
  %103 = vmatprep.subr.mxu0 0.0
  %104 = vmatpush2.msra.mxu0 0.0
  %105 = vmatprep.subr.mxu0 0.0
  %106 = vmatpush2.msra.mxu0 0.0
  %107 = vmatprep.subr.mxu0 0.0
  %108 = vmatpush2.msra.mxu0 0.0
  %109 = vmatprep.subr.mxu0 0.0
  %110 = vmatpush2.msra.mxu0 0.0
  %111 = vmatprep.subr.mxu0 0.0
  %112 = vmatpush2.msra.mxu0 0.0
  %113 = vmatprep.subr.mxu0 0.0
  %114 = vmatpush2.msra.mxu0 0.0
  %115 = vmatprep.subr.mxu0 0.0
  %116 = vmatpush2.msra.mxu0 0.0
  %117 = vmatprep.mubr.f32.mxu0 0.0
  %118 = vmatmul.mubr.f32.gmra.mxu0 %v51
  %v119 = vpop.f32.mrf.mxu0
  %v120 = vadd.f32 0.0, %v119
  %v121 = vpop.f32.mrf.mxu0
  %122 = vdwg.mxu0
  %v123 = vadd.f32 %v52, %v120
  %124 = vadd.xlane.f32.xlu0 %v123
  %v125 = vpop.xlane.xlu0 %124
  %v126 = vmul.f32 %v125, 0.03125
  %v127 = vsub.f32 %v123, %v126
  %v128 = vmul.f32 %v127, %v50
  %v129 = vmul.f32 %v128, %v128
  %130 = vadd.xlane.f32.xlu0 %v129
  %v131 = vpop.xlane.xlu0 %130
  %v132 = vmul.f32 %v131, 0.03125
  %v133 = vadd.f32 %v132, 1e-05
  %v134 = vrsqrt.pop %v133
  %v136 = vlaneseq
  %v137 = vshrl.u32 %v136, 7
  %v138 = vsub.s32 0, %v137
  %v139 = vrot.slane %v44, %v138
  %v141 = vmul.f32 %v134, %v139
  %v142 = vmul.f32 %v127, %v141
  %v144 = vlaneseq
  %v145 = vshrl.u32 %v144, 7
  %v146 = vsub.s32 0, %v145
  %v147 = vrot.slane %v45, %v146
  %v149 = vadd.f32 %v142, %v147
  %v150 = vtanh.pop %v149
  %151 = vst [vmem:[%s5] sm:$0xff] %v150
  %s152 = scalar_lea.vmem %s0, 8
  %v153 = vld [vmem:[%s152] sm:$0xff]
  %154 = vmatprep.subr.mxu0 0.0
  %155 = vmatpush1.msra.mxu0 %v43
  %156 = vmatprep.subr.mxu0 0.0
  %157 = vmatpush1.msra.mxu0 %v42
  %158 = vmatprep.subr.mxu0 0.0
  %159 = vmatpush1.msra.mxu0 %v41
  %160 = vmatprep.subr.mxu0 0.0
  %161 = vmatpush1.msra.mxu0 %v40
  %162 = vmatprep.subr.mxu0 0.0
  %163 = vmatpush1.msra.mxu0 %v39
  %164 = vmatprep.subr.mxu0 0.0
  %165 = vmatpush1.msra.mxu0 %v38
  %166 = vmatprep.subr.mxu0 0.0
  %167 = vmatpush1.msra.mxu0 %v37
  %168 = vmatprep.subr.mxu0 0.0
  %169 = vmatpush1.msra.mxu0 %v36
  %170 = vmatprep.subr.mxu0 0.0
  %171 = vmatpush1.msra.mxu0 %v35
  %172 = vmatprep.subr.mxu0 0.0
  %173 = vmatpush1.msra.mxu0 %v34
  %174 = vmatprep.subr.mxu0 0.0
  %175 = vmatpush1.msra.mxu0 %v33
  %176 = vmatprep.subr.mxu0 0.0
  %177 = vmatpush1.msra.mxu0 %v32
  %178 = vmatprep.subr.mxu0 0.0
  %179 = vmatpush1.msra.mxu0 %v31
  %180 = vmatprep.subr.mxu0 0.0
  %181 = vmatpush1.msra.mxu0 %v30
  %182 = vmatprep.subr.mxu0 0.0
  %183 = vmatpush1.msra.mxu0 %v29
  %184 = vmatprep.subr.mxu0 0.0
  %185 = vmatpush1.msra.mxu0 %v28
  %186 = vmatprep.subr.mxu0 0.0
  %187 = vmatpush2.msra.mxu0 0.0
  %188 = vmatprep.subr.mxu0 0.0
  %189 = vmatpush2.msra.mxu0 0.0
  %190 = vmatprep.subr.mxu0 0.0
  %191 = vmatpush2.msra.mxu0 0.0
  %192 = vmatprep.subr.mxu0 0.0
  %193 = vmatpush2.msra.mxu0 0.0
  %194 = vmatprep.subr.mxu0 0.0
  %195 = vmatpush2.msra.mxu0 0.0
  %196 = vmatprep.subr.mxu0 0.0
  %197 = vmatpush2.msra.mxu0 0.0
  %198 = vmatprep.subr.mxu0 0.0
  %199 = vmatpush2.msra.mxu0 0.0
  %200 = vmatprep.subr.mxu0 0.0
  %201 = vmatpush2.msra.mxu0 0.0
  %202 = vmatprep.subr.mxu0 0.0
  %203 = vmatpush2.msra.mxu0 0.0
  %204 = vmatprep.subr.mxu0 0.0
  %205 = vmatpush2.msra.mxu0 0.0
  %206 = vmatprep.subr.mxu0 0.0
  %207 = vmatpush2.msra.mxu0 0.0
  %208 = vmatprep.subr.mxu0 0.0
  %209 = vmatpush2.msra.mxu0 0.0
  %210 = vmatprep.subr.mxu0 0.0
  %211 = vmatpush2.msra.mxu0 0.0
  %212 = vmatprep.subr.mxu0 0.0
  %213 = vmatpush2.msra.mxu0 0.0
  %214 = vmatprep.subr.mxu0 0.0
  %215 = vmatpush2.msra.mxu0 0.0
  %216 = vmatprep.subr.mxu0 0.0
  %217 = vmatpush2.msra.mxu0 0.0
  %218 = vmatprep.mubr.f32.mxu0 0.0
  %219 = vmatmul.mubr.f32.gmra.mxu0 %v150
  %v220 = vpop.f32.mrf.mxu0
  %v221 = vadd.f32 0.0, %v220
  %v222 = vpop.f32.mrf.mxu0
  %223 = vdwg.mxu0
  %v224 = vadd.f32 %v153, %v221
  %225 = vadd.xlane.f32.xlu0 %v224
  %v226 = vpop.xlane.xlu0 %225
  %v227 = vmul.f32 %v226, 0.03125
  %v228 = vsub.f32 %v224, %v227
  %v229 = vmul.f32 %v228, %v50
  %v230 = vmul.f32 %v229, %v229
  %231 = vadd.xlane.f32.xlu0 %v230
  %v232 = vpop.xlane.xlu0 %231
  %v233 = vmul.f32 %v232, 0.03125
  %v234 = vadd.f32 %v233, 1e-05
  %v235 = vrsqrt.pop %v234
  %v236 = vmul.f32 %v235, %v139
  %v237 = vmul.f32 %v228, %v236
  %v238 = vadd.f32 %v237, %v147
  %v239 = vtanh.pop %v238
  %s240 = scalar_lea.vmem %s5, 8
  %241 = vst [vmem:[%s240] sm:$0xff] %v239
  %s242 = scalar_lea.vmem %s0, 16
  %v243 = vld [vmem:[%s242] sm:$0xff]
  %244 = vmatprep.subr.mxu0 0.0
  %245 = vmatpush1.msra.mxu0 %v43
  %246 = vmatprep.subr.mxu0 0.0
  %247 = vmatpush1.msra.mxu0 %v42
  %248 = vmatprep.subr.mxu0 0.0
  %249 = vmatpush1.msra.mxu0 %v41
  %250 = vmatprep.subr.mxu0 0.0
  %251 = vmatpush1.msra.mxu0 %v40
  %252 = vmatprep.subr.mxu0 0.0
  %253 = vmatpush1.msra.mxu0 %v39
  %254 = vmatprep.subr.mxu0 0.0
  %255 = vmatpush1.msra.mxu0 %v38
  %256 = vmatprep.subr.mxu0 0.0
  %257 = vmatpush1.msra.mxu0 %v37
  %258 = vmatprep.subr.mxu0 0.0
  %259 = vmatpush1.msra.mxu0 %v36
  %260 = vmatprep.subr.mxu0 0.0
  %261 = vmatpush1.msra.mxu0 %v35
  %262 = vmatprep.subr.mxu0 0.0
  %263 = vmatpush1.msra.mxu0 %v34
  %264 = vmatprep.subr.mxu0 0.0
  %265 = vmatpush1.msra.mxu0 %v33
  %266 = vmatprep.subr.mxu0 0.0
  %267 = vmatpush1.msra.mxu0 %v32
  %268 = vmatprep.subr.mxu0 0.0
  %269 = vmatpush1.msra.mxu0 %v31
  %270 = vmatprep.subr.mxu0 0.0
  %271 = vmatpush1.msra.mxu0 %v30
  %272 = vmatprep.subr.mxu0 0.0
  %273 = vmatpush1.msra.mxu0 %v29
  %274 = vmatprep.subr.mxu0 0.0
  %275 = vmatpush1.msra.mxu0 %v28
  %276 = vmatprep.subr.mxu0 0.0
  %277 = vmatpush2.msra.mxu0 0.0
  %278 = vmatprep.subr.mxu0 0.0
  %279 = vmatpush2.msra.mxu0 0.0
  %280 = vmatprep.subr.mxu0 0.0
  %281 = vmatpush2.msra.mxu0 0.0
  %282 = vmatprep.subr.mxu0 0.0
  %283 = vmatpush2.msra.mxu0 0.0
  %284 = vmatprep.subr.mxu0 0.0
  %285 = vmatpush2.msra.mxu0 0.0
  %286 = vmatprep.subr.mxu0 0.0
  %287 = vmatpush2.msra.mxu0 0.0
  %288 = vmatprep.subr.mxu0 0.0
  %289 = vmatpush2.msra.mxu0 0.0
  %290 = vmatprep.subr.mxu0 0.0
  %291 = vmatpush2.msra.mxu0 0.0
  %292 = vmatprep.subr.mxu0 0.0
  %293 = vmatpush2.msra.mxu0 0.0
  %294 = vmatprep.subr.mxu0 0.0
  %295 = vmatpush2.msra.mxu0 0.0
  %296 = vmatprep.subr.mxu0 0.0
  %297 = vmatpush2.msra.mxu0 0.0
  %298 = vmatprep.subr.mxu0 0.0
  %299 = vmatpush2.msra.mxu0 0.0
  %300 = vmatprep.subr.mxu0 0.0
  %301 = vmatpush2.msra.mxu0 0.0
  %302 = vmatprep.subr.mxu0 0.0
  %303 = vmatpush2.msra.mxu0 0.0
  %304 = vmatprep.subr.mxu0 0.0
  %305 = vmatpush2.msra.mxu0 0.0
  %306 = vmatprep.subr.mxu0 0.0
  %307 = vmatpush2.msra.mxu0 0.0
  %308 = vmatprep.mubr.f32.mxu0 0.0
  %309 = vmatmul.mubr.f32.gmra.mxu0 %v239
  %v310 = vpop.f32.mrf.mxu0
  %v311 = vadd.f32 0.0, %v310
  %v312 = vpop.f32.mrf.mxu0
  %313 = vdwg.mxu0
  %v314 = vadd.f32 %v243, %v311
  %315 = vadd.xlane.f32.xlu0 %v314
  %v316 = vpop.xlane.xlu0 %315
  %v317 = vmul.f32 %v316, 0.03125
  %v318 = vsub.f32 %v314, %v317
  %v319 = vmul.f32 %v318, %v50
  %v320 = vmul.f32 %v319, %v319
  %321 = vadd.xlane.f32.xlu0 %v320
  %v322 = vpop.xlane.xlu0 %321
  %v323 = vmul.f32 %v322, 0.03125
  %v324 = vadd.f32 %v323, 1e-05
  %v325 = vrsqrt.pop %v324
  %v326 = vmul.f32 %v325, %v139
  %v327 = vmul.f32 %v318, %v326
  %v328 = vadd.f32 %v327, %v147
  %v329 = vtanh.pop %v328
  %s330 = scalar_lea.vmem %s5, 16
  %331 = vst [vmem:[%s330] sm:$0xff] %v329
  %s332 = scalar_lea.vmem %s0, 24
  %v333 = vld [vmem:[%s332] sm:$0xff]
  %334 = vmatprep.subr.mxu0 0.0
  %335 = vmatpush1.msra.mxu0 %v43
  %336 = vmatprep.subr.mxu0 0.0
  %337 = vmatpush1.msra.mxu0 %v42
  %338 = vmatprep.subr.mxu0 0.0
  %339 = vmatpush1.msra.mxu0 %v41
  %340 = vmatprep.subr.mxu0 0.0
  %341 = vmatpush1.msra.mxu0 %v40
  %342 = vmatprep.subr.mxu0 0.0
  %343 = vmatpush1.msra.mxu0 %v39
  %344 = vmatprep.subr.mxu0 0.0
  %345 = vmatpush1.msra.mxu0 %v38
  %346 = vmatprep.subr.mxu0 0.0
  %347 = vmatpush1.msra.mxu0 %v37
  %348 = vmatprep.subr.mxu0 0.0
  %349 = vmatpush1.msra.mxu0 %v36
  %350 = vmatprep.subr.mxu0 0.0
  %351 = vmatpush1.msra.mxu0 %v35
  %352 = vmatprep.subr.mxu0 0.0
  %353 = vmatpush1.msra.mxu0 %v34
  %354 = vmatprep.subr.mxu0 0.0
  %355 = vmatpush1.msra.mxu0 %v33
  %356 = vmatprep.subr.mxu0 0.0
  %357 = vmatpush1.msra.mxu0 %v32
  %358 = vmatprep.subr.mxu0 0.0
  %359 = vmatpush1.msra.mxu0 %v31
  %360 = vmatprep.subr.mxu0 0.0
  %361 = vmatpush1.msra.mxu0 %v30
  %362 = vmatprep.subr.mxu0 0.0
  %363 = vmatpush1.msra.mxu0 %v29
  %364 = vmatprep.subr.mxu0 0.0
  %365 = vmatpush1.msra.mxu0 %v28
  %366 = vmatprep.subr.mxu0 0.0
  %367 = vmatpush2.msra.mxu0 0.0
  %368 = vmatprep.subr.mxu0 0.0
  %369 = vmatpush2.msra.mxu0 0.0
  %370 = vmatprep.subr.mxu0 0.0
  %371 = vmatpush2.msra.mxu0 0.0
  %372 = vmatprep.subr.mxu0 0.0
  %373 = vmatpush2.msra.mxu0 0.0
  %374 = vmatprep.subr.mxu0 0.0
  %375 = vmatpush2.msra.mxu0 0.0
  %376 = vmatprep.subr.mxu0 0.0
  %377 = vmatpush2.msra.mxu0 0.0
  %378 = vmatprep.subr.mxu0 0.0
  %379 = vmatpush2.msra.mxu0 0.0
  %380 = vmatprep.subr.mxu0 0.0
  %381 = vmatpush2.msra.mxu0 0.0
  %382 = vmatprep.subr.mxu0 0.0
  %383 = vmatpush2.msra.mxu0 0.0
  %384 = vmatprep.subr.mxu0 0.0
  %385 = vmatpush2.msra.mxu0 0.0
  %386 = vmatprep.subr.mxu0 0.0
  %387 = vmatpush2.msra.mxu0 0.0
  %388 = vmatprep.subr.mxu0 0.0
  %389 = vmatpush2.msra.mxu0 0.0
  %390 = vmatprep.subr.mxu0 0.0
  %391 = vmatpush2.msra.mxu0 0.0
  %392 = vmatprep.subr.mxu0 0.0
  %393 = vmatpush2.msra.mxu0 0.0
  %394 = vmatprep.subr.mxu0 0.0
  %395 = vmatpush2.msra.mxu0 0.0
  %396 = vmatprep.subr.mxu0 0.0
  %397 = vmatpush2.msra.mxu0 0.0
  %398 = vmatprep.mubr.f32.mxu0 0.0
  %399 = vmatmul.mubr.f32.gmra.mxu0 %v329
  %v400 = vpop.f32.mrf.mxu0
  %v401 = vadd.f32 0.0, %v400
  %v402 = vpop.f32.mrf.mxu0
  %403 = vdwg.mxu0
  %v404 = vadd.f32 %v333, %v401
  %405 = vadd.xlane.f32.xlu0 %v404
  %v406 = vpop.xlane.xlu0 %405
  %v407 = vmul.f32 %v406, 0.03125
  %v408 = vsub.f32 %v404, %v407
  %v409 = vmul.f32 %v408, %v50
  %v410 = vmul.f32 %v409, %v409
  %411 = vadd.xlane.f32.xlu0 %v410
  %v412 = vpop.xlane.xlu0 %411
  %v413 = vmul.f32 %v412, 0.03125
  %v414 = vadd.f32 %v413, 1e-05
  %v415 = vrsqrt.pop %v414
  %v416 = vmul.f32 %v415, %v139
  %v417 = vmul.f32 %v408, %v416
  %v418 = vadd.f32 %v417, %v147
  %v419 = vtanh.pop %v418
  %s420 = scalar_lea.vmem %s5, 24
  %421 = vst [vmem:[%s420] sm:$0xff] %v419
  %s422 = scalar_lea.vmem %s0, 32
  %v423 = vld [vmem:[%s422] sm:$0xff]
  %424 = vmatprep.subr.mxu0 0.0
  %425 = vmatpush1.msra.mxu0 %v43
  %426 = vmatprep.subr.mxu0 0.0
  %427 = vmatpush1.msra.mxu0 %v42
  %428 = vmatprep.subr.mxu0 0.0
  %429 = vmatpush1.msra.mxu0 %v41
  %430 = vmatprep.subr.mxu0 0.0
  %431 = vmatpush1.msra.mxu0 %v40
  %432 = vmatprep.subr.mxu0 0.0
  %433 = vmatpush1.msra.mxu0 %v39
  %434 = vmatprep.subr.mxu0 0.0
  %435 = vmatpush1.msra.mxu0 %v38
  %436 = vmatprep.subr.mxu0 0.0
  %437 = vmatpush1.msra.mxu0 %v37
  %438 = vmatprep.subr.mxu0 0.0
  %439 = vmatpush1.msra.mxu0 %v36
  %440 = vmatprep.subr.mxu0 0.0
  %441 = vmatpush1.msra.mxu0 %v35
  %442 = vmatprep.subr.mxu0 0.0
  %443 = vmatpush1.msra.mxu0 %v34
  %444 = vmatprep.subr.mxu0 0.0
  %445 = vmatpush1.msra.mxu0 %v33
  %446 = vmatprep.subr.mxu0 0.0
  %447 = vmatpush1.msra.mxu0 %v32
  %448 = vmatprep.subr.mxu0 0.0
  %449 = vmatpush1.msra.mxu0 %v31
  %450 = vmatprep.subr.mxu0 0.0
  %451 = vmatpush1.msra.mxu0 %v30
  %452 = vmatprep.subr.mxu0 0.0
  %453 = vmatpush1.msra.mxu0 %v29
  %454 = vmatprep.subr.mxu0 0.0
  %455 = vmatpush1.msra.mxu0 %v28
  %456 = vmatprep.subr.mxu0 0.0
  %457 = vmatpush2.msra.mxu0 0.0
  %458 = vmatprep.subr.mxu0 0.0
  %459 = vmatpush2.msra.mxu0 0.0
  %460 = vmatprep.subr.mxu0 0.0
  %461 = vmatpush2.msra.mxu0 0.0
  %462 = vmatprep.subr.mxu0 0.0
  %463 = vmatpush2.msra.mxu0 0.0
  %464 = vmatprep.subr.mxu0 0.0
  %465 = vmatpush2.msra.mxu0 0.0
  %466 = vmatprep.subr.mxu0 0.0
  %467 = vmatpush2.msra.mxu0 0.0
  %468 = vmatprep.subr.mxu0 0.0
  %469 = vmatpush2.msra.mxu0 0.0
  %470 = vmatprep.subr.mxu0 0.0
  %471 = vmatpush2.msra.mxu0 0.0
  %472 = vmatprep.subr.mxu0 0.0
  %473 = vmatpush2.msra.mxu0 0.0
  %474 = vmatprep.subr.mxu0 0.0
  %475 = vmatpush2.msra.mxu0 0.0
  %476 = vmatprep.subr.mxu0 0.0
  %477 = vmatpush2.msra.mxu0 0.0
  %478 = vmatprep.subr.mxu0 0.0
  %479 = vmatpush2.msra.mxu0 0.0
  %480 = vmatprep.subr.mxu0 0.0
  %481 = vmatpush2.msra.mxu0 0.0
  %482 = vmatprep.subr.mxu0 0.0
  %483 = vmatpush2.msra.mxu0 0.0
  %484 = vmatprep.subr.mxu0 0.0
  %485 = vmatpush2.msra.mxu0 0.0
  %486 = vmatprep.subr.mxu0 0.0
  %487 = vmatpush2.msra.mxu0 0.0
  %488 = vmatprep.mubr.f32.mxu0 0.0
  %489 = vmatmul.mubr.f32.gmra.mxu0 %v419
  %v490 = vpop.f32.mrf.mxu0
  %v491 = vadd.f32 0.0, %v490
  %v492 = vpop.f32.mrf.mxu0
  %493 = vdwg.mxu0
  %v494 = vadd.f32 %v423, %v491
  %495 = vadd.xlane.f32.xlu0 %v494
  %v496 = vpop.xlane.xlu0 %495
  %v497 = vmul.f32 %v496, 0.03125
  %v498 = vsub.f32 %v494, %v497
  %v499 = vmul.f32 %v498, %v50
  %v500 = vmul.f32 %v499, %v499
  %501 = vadd.xlane.f32.xlu0 %v500
  %v502 = vpop.xlane.xlu0 %501
  %v503 = vmul.f32 %v502, 0.03125
  %v504 = vadd.f32 %v503, 1e-05
  %v505 = vrsqrt.pop %v504
  %v506 = vmul.f32 %v505, %v139
  %v507 = vmul.f32 %v498, %v506
  %v508 = vadd.f32 %v507, %v147
  %v509 = vtanh.pop %v508
  %s510 = scalar_lea.vmem %s5, 32
  %511 = vst [vmem:[%s510] sm:$0xff] %v509
  %s512 = scalar_lea.vmem %s0, 40
  %v513 = vld [vmem:[%s512] sm:$0xff]
  %514 = vmatprep.subr.mxu0 0.0
  %515 = vmatpush1.msra.mxu0 %v43
  %516 = vmatprep.subr.mxu0 0.0
  %517 = vmatpush1.msra.mxu0 %v42
  %518 = vmatprep.subr.mxu0 0.0
  %519 = vmatpush1.msra.mxu0 %v41
  %520 = vmatprep.subr.mxu0 0.0
  %521 = vmatpush1.msra.mxu0 %v40
  %522 = vmatprep.subr.mxu0 0.0
  %523 = vmatpush1.msra.mxu0 %v39
  %524 = vmatprep.subr.mxu0 0.0
  %525 = vmatpush1.msra.mxu0 %v38
  %526 = vmatprep.subr.mxu0 0.0
  %527 = vmatpush1.msra.mxu0 %v37
  %528 = vmatprep.subr.mxu0 0.0
  %529 = vmatpush1.msra.mxu0 %v36
  %530 = vmatprep.subr.mxu0 0.0
  %531 = vmatpush1.msra.mxu0 %v35
  %532 = vmatprep.subr.mxu0 0.0
  %533 = vmatpush1.msra.mxu0 %v34
  %534 = vmatprep.subr.mxu0 0.0
  %535 = vmatpush1.msra.mxu0 %v33
  %536 = vmatprep.subr.mxu0 0.0
  %537 = vmatpush1.msra.mxu0 %v32
  %538 = vmatprep.subr.mxu0 0.0
  %539 = vmatpush1.msra.mxu0 %v31
  %540 = vmatprep.subr.mxu0 0.0
  %541 = vmatpush1.msra.mxu0 %v30
  %542 = vmatprep.subr.mxu0 0.0
  %543 = vmatpush1.msra.mxu0 %v29
  %544 = vmatprep.subr.mxu0 0.0
  %545 = vmatpush1.msra.mxu0 %v28
  %546 = vmatprep.subr.mxu0 0.0
  %547 = vmatpush2.msra.mxu0 0.0
  %548 = vmatprep.subr.mxu0 0.0
  %549 = vmatpush2.msra.mxu0 0.0
  %550 = vmatprep.subr.mxu0 0.0
  %551 = vmatpush2.msra.mxu0 0.0
  %552 = vmatprep.subr.mxu0 0.0
  %553 = vmatpush2.msra.mxu0 0.0
  %554 = vmatprep.subr.mxu0 0.0
  %555 = vmatpush2.msra.mxu0 0.0
  %556 = vmatprep.subr.mxu0 0.0
  %557 = vmatpush2.msra.mxu0 0.0
  %558 = vmatprep.subr.mxu0 0.0
  %559 = vmatpush2.msra.mxu0 0.0
  %560 = vmatprep.subr.mxu0 0.0
  %561 = vmatpush2.msra.mxu0 0.0
  %562 = vmatprep.subr.mxu0 0.0
  %563 = vmatpush2.msra.mxu0 0.0
  %564 = vmatprep.subr.mxu0 0.0
  %565 = vmatpush2.msra.mxu0 0.0
  %566 = vmatprep.subr.mxu0 0.0
  %567 = vmatpush2.msra.mxu0 0.0
  %568 = vmatprep.subr.mxu0 0.0
  %569 = vmatpush2.msra.mxu0 0.0
  %570 = vmatprep.subr.mxu0 0.0
  %571 = vmatpush2.msra.mxu0 0.0
  %572 = vmatprep.subr.mxu0 0.0
  %573 = vmatpush2.msra.mxu0 0.0
  %574 = vmatprep.subr.mxu0 0.0
  %575 = vmatpush2.msra.mxu0 0.0
  %576 = vmatprep.subr.mxu0 0.0
  %577 = vmatpush2.msra.mxu0 0.0
  %578 = vmatprep.mubr.f32.mxu0 0.0
  %579 = vmatmul.mubr.f32.gmra.mxu0 %v509
  %v580 = vpop.f32.mrf.mxu0
  %v581 = vadd.f32 0.0, %v580
  %v582 = vpop.f32.mrf.mxu0
  %583 = vdwg.mxu0
  %v584 = vadd.f32 %v513, %v581
  %585 = vadd.xlane.f32.xlu0 %v584
  %v586 = vpop.xlane.xlu0 %585
  %v587 = vmul.f32 %v586, 0.03125
  %v588 = vsub.f32 %v584, %v587
  %v589 = vmul.f32 %v588, %v50
  %v590 = vmul.f32 %v589, %v589
  %591 = vadd.xlane.f32.xlu0 %v590
  %v592 = vpop.xlane.xlu0 %591
  %v593 = vmul.f32 %v592, 0.03125
  %v594 = vadd.f32 %v593, 1e-05
  %v595 = vrsqrt.pop %v594
  %v596 = vmul.f32 %v595, %v139
  %v597 = vmul.f32 %v588, %v596
  %v598 = vadd.f32 %v597, %v147
  %v599 = vtanh.pop %v598
  %s600 = scalar_lea.vmem %s5, 40
  %601 = vst [vmem:[%s600] sm:$0xff] %v599
  %s602 = scalar_lea.vmem %s0, 48
  %v603 = vld [vmem:[%s602] sm:$0xff]
  %604 = vmatprep.subr.mxu0 0.0
  %605 = vmatpush1.msra.mxu0 %v43
  %606 = vmatprep.subr.mxu0 0.0
  %607 = vmatpush1.msra.mxu0 %v42
  %608 = vmatprep.subr.mxu0 0.0
  %609 = vmatpush1.msra.mxu0 %v41
  %610 = vmatprep.subr.mxu0 0.0
  %611 = vmatpush1.msra.mxu0 %v40
  %612 = vmatprep.subr.mxu0 0.0
  %613 = vmatpush1.msra.mxu0 %v39
  %614 = vmatprep.subr.mxu0 0.0
  %615 = vmatpush1.msra.mxu0 %v38
  %616 = vmatprep.subr.mxu0 0.0
  %617 = vmatpush1.msra.mxu0 %v37
  %618 = vmatprep.subr.mxu0 0.0
  %619 = vmatpush1.msra.mxu0 %v36
  %620 = vmatprep.subr.mxu0 0.0
  %621 = vmatpush1.msra.mxu0 %v35
  %622 = vmatprep.subr.mxu0 0.0
  %623 = vmatpush1.msra.mxu0 %v34
  %624 = vmatprep.subr.mxu0 0.0
  %625 = vmatpush1.msra.mxu0 %v33
  %626 = vmatprep.subr.mxu0 0.0
  %627 = vmatpush1.msra.mxu0 %v32
  %628 = vmatprep.subr.mxu0 0.0
  %629 = vmatpush1.msra.mxu0 %v31
  %630 = vmatprep.subr.mxu0 0.0
  %631 = vmatpush1.msra.mxu0 %v30
  %632 = vmatprep.subr.mxu0 0.0
  %633 = vmatpush1.msra.mxu0 %v29
  %634 = vmatprep.subr.mxu0 0.0
  %635 = vmatpush1.msra.mxu0 %v28
  %636 = vmatprep.subr.mxu0 0.0
  %637 = vmatpush2.msra.mxu0 0.0
  %638 = vmatprep.subr.mxu0 0.0
  %639 = vmatpush2.msra.mxu0 0.0
  %640 = vmatprep.subr.mxu0 0.0
  %641 = vmatpush2.msra.mxu0 0.0
  %642 = vmatprep.subr.mxu0 0.0
  %643 = vmatpush2.msra.mxu0 0.0
  %644 = vmatprep.subr.mxu0 0.0
  %645 = vmatpush2.msra.mxu0 0.0
  %646 = vmatprep.subr.mxu0 0.0
  %647 = vmatpush2.msra.mxu0 0.0
  %648 = vmatprep.subr.mxu0 0.0
  %649 = vmatpush2.msra.mxu0 0.0
  %650 = vmatprep.subr.mxu0 0.0
  %651 = vmatpush2.msra.mxu0 0.0
  %652 = vmatprep.subr.mxu0 0.0
  %653 = vmatpush2.msra.mxu0 0.0
  %654 = vmatprep.subr.mxu0 0.0
  %655 = vmatpush2.msra.mxu0 0.0
  %656 = vmatprep.subr.mxu0 0.0
  %657 = vmatpush2.msra.mxu0 0.0
  %658 = vmatprep.subr.mxu0 0.0
  %659 = vmatpush2.msra.mxu0 0.0
  %660 = vmatprep.subr.mxu0 0.0
  %661 = vmatpush2.msra.mxu0 0.0
  %662 = vmatprep.subr.mxu0 0.0
  %663 = vmatpush2.msra.mxu0 0.0
  %664 = vmatprep.subr.mxu0 0.0
  %665 = vmatpush2.msra.mxu0 0.0
  %666 = vmatprep.subr.mxu0 0.0
  %667 = vmatpush2.msra.mxu0 0.0
  %668 = vmatprep.mubr.f32.mxu0 0.0
  %669 = vmatmul.mubr.f32.gmra.mxu0 %v599
  %v670 = vpop.f32.mrf.mxu0
  %v671 = vadd.f32 0.0, %v670
  %v672 = vpop.f32.mrf.mxu0
  %673 = vdwg.mxu0
  %v674 = vadd.f32 %v603, %v671
  %675 = vadd.xlane.f32.xlu0 %v674
  %v676 = vpop.xlane.xlu0 %675
  %v677 = vmul.f32 %v676, 0.03125
  %v678 = vsub.f32 %v674, %v677
  %v679 = vmul.f32 %v678, %v50
  %v680 = vmul.f32 %v679, %v679
  %681 = vadd.xlane.f32.xlu0 %v680
  %v682 = vpop.xlane.xlu0 %681
  %v683 = vmul.f32 %v682, 0.03125
  %v684 = vadd.f32 %v683, 1e-05
  %v685 = vrsqrt.pop %v684
  %v686 = vmul.f32 %v685, %v139
  %v687 = vmul.f32 %v678, %v686
  %v688 = vadd.f32 %v687, %v147
  %v689 = vtanh.pop %v688
  %s690 = scalar_lea.vmem %s5, 48
  %691 = vst [vmem:[%s690] sm:$0xff] %v689
  %s692 = scalar_lea.vmem %s0, 56
  %v693 = vld [vmem:[%s692] sm:$0xff]
  %694 = vmatprep.subr.mxu0 0.0
  %695 = vmatpush1.msra.mxu0 %v43
  %696 = vmatprep.subr.mxu0 0.0
  %697 = vmatpush1.msra.mxu0 %v42
  %698 = vmatprep.subr.mxu0 0.0
  %699 = vmatpush1.msra.mxu0 %v41
  %700 = vmatprep.subr.mxu0 0.0
  %701 = vmatpush1.msra.mxu0 %v40
  %702 = vmatprep.subr.mxu0 0.0
  %703 = vmatpush1.msra.mxu0 %v39
  %704 = vmatprep.subr.mxu0 0.0
  %705 = vmatpush1.msra.mxu0 %v38
  %706 = vmatprep.subr.mxu0 0.0
  %707 = vmatpush1.msra.mxu0 %v37
  %708 = vmatprep.subr.mxu0 0.0
  %709 = vmatpush1.msra.mxu0 %v36
  %710 = vmatprep.subr.mxu0 0.0
  %711 = vmatpush1.msra.mxu0 %v35
  %712 = vmatprep.subr.mxu0 0.0
  %713 = vmatpush1.msra.mxu0 %v34
  %714 = vmatprep.subr.mxu0 0.0
  %715 = vmatpush1.msra.mxu0 %v33
  %716 = vmatprep.subr.mxu0 0.0
  %717 = vmatpush1.msra.mxu0 %v32
  %718 = vmatprep.subr.mxu0 0.0
  %719 = vmatpush1.msra.mxu0 %v31
  %720 = vmatprep.subr.mxu0 0.0
  %721 = vmatpush1.msra.mxu0 %v30
  %722 = vmatprep.subr.mxu0 0.0
  %723 = vmatpush1.msra.mxu0 %v29
  %724 = vmatprep.subr.mxu0 0.0
  %725 = vmatpush1.msra.mxu0 %v28
  %726 = vmatprep.subr.mxu0 0.0
  %727 = vmatpush2.msra.mxu0 0.0
  %728 = vmatprep.subr.mxu0 0.0
  %729 = vmatpush2.msra.mxu0 0.0
  %730 = vmatprep.subr.mxu0 0.0
  %731 = vmatpush2.msra.mxu0 0.0
  %732 = vmatprep.subr.mxu0 0.0
  %733 = vmatpush2.msra.mxu0 0.0
  %734 = vmatprep.subr.mxu0 0.0
  %735 = vmatpush2.msra.mxu0 0.0
  %736 = vmatprep.subr.mxu0 0.0
  %737 = vmatpush2.msra.mxu0 0.0
  %738 = vmatprep.subr.mxu0 0.0
  %739 = vmatpush2.msra.mxu0 0.0
  %740 = vmatprep.subr.mxu0 0.0
  %741 = vmatpush2.msra.mxu0 0.0
  %742 = vmatprep.subr.mxu0 0.0
  %743 = vmatpush2.msra.mxu0 0.0
  %744 = vmatprep.subr.mxu0 0.0
  %745 = vmatpush2.msra.mxu0 0.0
  %746 = vmatprep.subr.mxu0 0.0
  %747 = vmatpush2.msra.mxu0 0.0
  %748 = vmatprep.subr.mxu0 0.0
  %749 = vmatpush2.msra.mxu0 0.0
  %750 = vmatprep.subr.mxu0 0.0
  %751 = vmatpush2.msra.mxu0 0.0
  %752 = vmatprep.subr.mxu0 0.0
  %753 = vmatpush2.msra.mxu0 0.0
  %754 = vmatprep.subr.mxu0 0.0
  %755 = vmatpush2.msra.mxu0 0.0
  %756 = vmatprep.subr.mxu0 0.0
  %757 = vmatpush2.msra.mxu0 0.0
  %758 = vmatprep.mubr.f32.mxu0 0.0
  %759 = vmatmul.mubr.f32.gmra.mxu0 %v689
  %v760 = vpop.f32.mrf.mxu0
  %v761 = vadd.f32 0.0, %v760
  %v762 = vpop.f32.mrf.mxu0
  %763 = vdwg.mxu0
  %v764 = vadd.f32 %v693, %v761
  %765 = vadd.xlane.f32.xlu0 %v764
  %v766 = vpop.xlane.xlu0 %765
  %v767 = vmul.f32 %v766, 0.03125
  %v768 = vsub.f32 %v764, %v767
  %v769 = vmul.f32 %v768, %v50
  %v770 = vmul.f32 %v769, %v769
  %771 = vadd.xlane.f32.xlu0 %v770
  %v772 = vpop.xlane.xlu0 %771
  %v773 = vmul.f32 %v772, 0.03125
  %v774 = vadd.f32 %v773, 1e-05
  %v775 = vrsqrt.pop %v774
  %v776 = vmul.f32 %v775, %v139
  %v777 = vmul.f32 %v768, %v776
  %v778 = vadd.f32 %v777, %v147
  %v779 = vtanh.pop %v778
  %s780 = scalar_lea.vmem %s5, 56
  %781 = vst [vmem:[%s780] sm:$0xff] %v779
  %782 = vst [vmem:[#allocation2] sm:$0xff] %v779
  // Predicated region
  $region26: #{rnn_layer_forward.1} parent=0 // pred_check
    %p783 = pneg %p22
  $region27: #{rnn_layer_forward.1} parent=0 // pred_check_branch
    %785 = sbr.rel (%p783) target = $region29
  $region28: #{rnn_layer_forward.1} parent=0 // pred_region
    %786 = vst [vmem:[%s6] sm:$0xff] %v779
  $region29: #{rnn_layer_forward.1} parent=0 // pred_fallthru
    _
  // Predicated region
  $region30: #{rnn_layer_forward.1} parent=0 // pred_check
    _
  $region31: #{rnn_layer_forward.1} parent=0 // pred_check_branch
    %788 = sbr.rel (0) target = $region33
  $region32: #{rnn_layer_forward.1} parent=0 // pred_region
    _
  $region33: #{rnn_layer_forward.1} parent=0 // pred_fallthru
    _
  // Predicated region
  $region34: #{rnn_layer_forward.1} parent=0 // pred_check
    _
  $region35: #{rnn_layer_forward.1} parent=0 // pred_check_branch
    %790 = sbr.rel (0) target = $region37
  $region36: #{rnn_layer_forward.1} parent=0 // pred_region
    _
  $region37: #{rnn_layer_forward.1} parent=0 // pred_fallthru
    _
  // Predicated region
  $region38: #{rnn_layer_forward.1} parent=0 // pred_check
    _
  $region39: #{rnn_layer_forward.1} parent=0 // pred_check_branch
    %792 = sbr.rel (0) target = $region41
  $region40: #{rnn_layer_forward.1} parent=0 // pred_region
    _
  $region41: #{rnn_layer_forward.1} parent=0 // pred_fallthru
    _
  // Predicated region
  $region42: #{rnn_layer_forward.1} parent=0 // pred_check
    _
  $region43: #{rnn_layer_forward.1} parent=0 // pred_check_branch
    %794 = sbr.rel (0) target = $region45
  $region44: #{rnn_layer_forward.1} parent=0 // pred_region
    _
  $region45: #{rnn_layer_forward.1} parent=0 // pred_fallthru
    _

</llo_original>
